<compile_context>
chip_gen: v6e
topology: v6e:2x2x1
jax: 0.10.0
libtpu: 0.0.40
codegen_flags: <defaults>
</compile_context>

<pallas_src>
import jax
import jax.numpy as jnp
from jax.experimental import pallas as pl
from jax.experimental.pallas import tpu as pltpu

_VAL_PAD = 8  # width of the small f32 value output (value in col 0, rest zero)


def a2c_kernel(x_ref, w1_ref, b1_ref, w2_ref, b2_ref, out_pv_ref, out_val_ref):
    # bf16 matmul inputs, f32 accumulation.  Casting x here (VPU) avoids a
    # separate XLA pass over x in HBM; if x already arrives bf16 this is a no-op.
    x = x_ref[...].astype(jnp.bfloat16)
    # Fused hidden layer for both heads: [tb, in] @ [in, 128] -> [tb, 128]
    h = jnp.dot(x, w1_ref[...], preferred_element_type=jnp.float32)
    h = jnp.maximum(h + b1_ref[...], 0.0)
    # Block-diagonal second layer: [tb, 128] @ [128, 128] -> [tb, 128]
    # (col 0 = value, cols [8 : 8+n_actions] = policy logits, rest zeros)
    out = jnp.dot(h.astype(jnp.bfloat16), w2_ref[...],
                  preferred_element_type=jnp.float32) + b2_ref[...]
    # Lane-dense bf16 store of the whole slab (dominant HBM stream, halved).
    out_pv_ref[...] = out.astype(jnp.bfloat16)
    # Full-precision re-store of the value column (leading lanes, no rotate).
    out_val_ref[...] = out[:, : out_val_ref.shape[1]]


def a2c_forward(x, params, *, tb=None):
    """x: [B, input_size] (f32 or bf16).  params: w1p,b1p,w2p,b2p,w1v,b1v,w2v,b2v
    (weights [in, out], biases [1, out]).  Returns (policy [B, n_actions] f32,
    value [B, 1] f32)."""
    B, input_size = x.shape
    hidden = params["w1p"].shape[1]            # 64
    n_actions = params["w2p"].shape[1]
    h2 = 2 * hidden                            # 128: fused hidden width
    out_width = ((_VAL_PAD + n_actions + 127) // 128) * 128   # lane-dense

    # ---- wrapper-side weight packing (pure layout plumbing, tiny) ----
    w1 = jnp.concatenate([params["w1p"], params["w1v"]],
                         axis=1).astype(jnp.bfloat16)          # [in, 128]
    b1 = jnp.concatenate([params["b1p"], params["b1v"]],
                         axis=1).astype(jnp.float32)           # [1, 128]
    w2 = jnp.zeros((h2, out_width), jnp.float32)
    w2 = w2.at[hidden:, 0:1].set(params["w2v"])                        # value
    w2 = w2.at[:hidden, _VAL_PAD:_VAL_PAD + n_actions].set(params["w2p"])  # policy
    w2 = w2.astype(jnp.bfloat16)
    b2 = jnp.zeros((1, out_width), jnp.float32)
    b2 = b2.at[:, 0:1].set(params["b2v"])
    b2 = b2.at[:, _VAL_PAD:_VAL_PAD + n_actions].set(params["b2p"])

    # ---- batch tiling: big tiles, but >=2 tiles once B > 64 (v7x megacore) ----
    if tb is None:
        tb = min(4096, -(-B // 2)) if B > 64 else B
    tb = max(16, ((tb + 15) // 16) * 16)       # multiple of 16 (bf16 sublane pack)
    n_tiles = pl.cdiv(B, tb)                   # partial last block handled by Pallas

    flops = 2 * B * (input_size * h2 + h2 * out_width)
    bytes_accessed = (4 * B * input_size            # x read (f32)
                      + 2 * B * out_width           # bf16 policy+value store
                      + 4 * B * _VAL_PAD            # f32 value re-store
                      + 2 * (w1.size + w2.size) + 4 * (b1.size + b2.size))

    out_pv, out_val = pl.pallas_call(
        a2c_kernel,
        out_shape=(jax.ShapeDtypeStruct((B, out_width), jnp.bfloat16),
                   jax.ShapeDtypeStruct((B, _VAL_PAD), jnp.float32)),
        grid_spec=pltpu.PrefetchScalarGridSpec(
            num_scalar_prefetch=0,
            grid=(n_tiles,),
            in_specs=[
                pl.BlockSpec((tb, input_size), lambda i: (i, 0)),   # x tile
                pl.BlockSpec((input_size, h2), lambda i: (0, 0)),   # fused W1
                pl.BlockSpec((1, h2), lambda i: (0, 0)),            # fused b1
                pl.BlockSpec((h2, out_width), lambda i: (0, 0)),    # fused W2
                pl.BlockSpec((1, out_width), lambda i: (0, 0)),     # fused b2
            ],
            out_specs=(pl.BlockSpec((tb, out_width), lambda i: (i, 0)),
                       pl.BlockSpec((tb, _VAL_PAD), lambda i: (i, 0))),
        ),
        compiler_params=pltpu.CompilerParams(
            dimension_semantics=("parallel",),
            # x pads 32->128 lanes in VMEM; double-buffered tiles at tb=4096 are
            # ~10 MiB total. 48 MiB covers v5e's 16 MiB default scoped limit and
            # stays under v7x's 64 MiB physical VMEM.
            vmem_limit_bytes=48 * 1024 * 1024),
        cost_estimate=pl.CostEstimate(
            flops=flops, transcendentals=0, bytes_accessed=bytes_accessed),
    )(x, w1, b1, w2, b2)

    pol = out_pv[:, _VAL_PAD:_VAL_PAD + n_actions].astype(jnp.float32)
    val = out_val[:, 0:1]
    return pol, val


def init_params(key, input_size, n_actions, hidden=64):
    """Deterministic init mimicking PyTorch Linear default (uniform +-1/sqrt(fan_in))."""
    ks = jax.random.split(key, 8)

    def lin(kw, kb, fan_in, fan_out):
        bound = 1.0 / (fan_in ** 0.5)
        w = jax.random.uniform(kw, (fan_in, fan_out), jnp.float32, -bound, bound)
        b = jax.random.uniform(kb, (1, fan_out), jnp.float32, -bound, bound)
        return w, b

    w1p, b1p = lin(ks[0], ks[1], input_size, hidden)
    w2p, b2p = lin(ks[2], ks[3], hidden, n_actions)
    w1v, b1v = lin(ks[4], ks[5], input_size, hidden)
    w2v, b2v = lin(ks[6], ks[7], hidden, 1)
    return dict(w1p=w1p, b1p=b1p, w2p=w2p, b2p=b2p,
                w1v=w1v, b1v=b1v, w2v=w2v, b2v=b2v)


def reference_forward(x, p):
    """Pure-f32 reference (matches the PyTorch module exactly)."""
    hp = jnp.maximum(x @ p["w1p"] + p["b1p"], 0.0)
    pol = hp @ p["w2p"] + p["b2p"]
    hv = jnp.maximum(x @ p["w1v"] + p["b1v"], 0.0)
    val = hv @ p["w2v"] + p["b2v"]
    return pol, val


def reference_forward_bf16(x, p):
    """Reference with the same bf16-input / f32-accumulate matmuls as the kernel."""
    bf = jnp.bfloat16

    def mm(a, b):
        return jnp.dot(a.astype(bf), b.astype(bf),
                       preferred_element_type=jnp.float32)

    hp = jnp.maximum(mm(x, p["w1p"]) + p["b1p"], 0.0)
    pol = mm(hp, p["w2p"]) + p["b2p"]
    hv = jnp.maximum(mm(x, p["w1v"]) + p["b1v"], 0.0)
    val = mm(hv, p["w2v"]) + p["b2v"]
    return pol, val


if __name__ == "__main__":
    key = jax.random.PRNGKey(0)
    k_x, k_p = jax.random.split(key)

    B, input_size, n_actions = 8, 32, 8
    x = jax.random.normal(k_x, (B, input_size), jnp.float32)
    params = init_params(k_p, input_size, n_actions)

    pol, val = a2c_forward(x, params)
    jax.block_until_ready((pol, val))
    assert pol.shape == (B, n_actions) and val.shape == (B, 1)

    # Tight check vs a reference using the same bf16-input matmul numerics.
    pol_bf, val_bf = reference_forward_bf16(x, params)
    pol_bf = pol_bf.astype(jnp.bfloat16).astype(jnp.float32)
    assert jnp.allclose(pol, pol_bf, atol=2e-2, rtol=2e-2)
    assert jnp.allclose(val, val_bf, atol=1e-3, rtol=1e-3)

    # Loose semantic check vs the pure-f32 PyTorch-equivalent forward.
    pol_f32, val_f32 = reference_forward(x, params)
    assert jnp.allclose(pol, pol_f32, atol=1e-1, rtol=1e-1)
    assert jnp.allclose(val, val_f32, atol=1e-1, rtol=1e-1)

    # Larger, non-tile-divisible batch: exercises >=2 grid tiles (v7x megacore
    # sharding) and the masked partial last block (no wrapper-side jnp.pad).
    B2 = 300
    x2 = jax.random.normal(jax.random.PRNGKey(1), (B2, input_size), jnp.float32)
    pol2, val2 = a2c_forward(x2, params)             # default tb -> 2 tiles
    pol2b, val2b = a2c_forward(x2, params, tb=128)   # 3 tiles, partial last block
    jax.block_until_ready((pol2, val2, pol2b, val2b))
    pol2_bf, val2_bf = reference_forward_bf16(x2, params)
    pol2_bf = pol2_bf.astype(jnp.bfloat16).astype(jnp.float32)
    for p_, v_ in ((pol2, val2), (pol2b, val2b)):
        assert p_.shape == (B2, n_actions) and v_.shape == (B2, 1)
        assert jnp.allclose(p_, pol2_bf, atol=2e-2, rtol=2e-2)
        assert jnp.allclose(v_, val2_bf, atol=1e-3, rtol=1e-3)

    print("KERNEL_OK")
</pallas_src>

<mosaic_0001>
module attributes {stable_mosaic.version = 11 : i64} {
  func.func @a2c_kernel(%arg0: i32, %arg1: memref<16x32xf32, #tpu.memory_space<vmem>>, %arg2: memref<32x128xbf16, #tpu.memory_space<vmem>>, %arg3: memref<1x128xf32, #tpu.memory_space<vmem>>, %arg4: memref<128x128xbf16, #tpu.memory_space<vmem>>, %arg5: memref<1x128xf32, #tpu.memory_space<vmem>>, %arg6: memref<16x128xbf16, #tpu.memory_space<vmem>>, %arg7: memref<16x8xf32, #tpu.memory_space<vmem>>) attributes {dimension_semantics = [#tpu.dimension_semantics<parallel>], iteration_bounds = array<i64: 1>, scalar_prefetch = 0 : i64, scratch_operands = 0 : i64, tpu.core_type = #tpu.core_type<tc>, window_params = [{transform_indices = @transform_0, window_bounds = array<i64: 16, 32>}, {pipeline_mode = #tpu.pipeline_mode<synchronous>, transform_indices = @transform_1, window_bounds = array<i64: 32, 128>}, {pipeline_mode = #tpu.pipeline_mode<synchronous>, transform_indices = @transform_2, window_bounds = array<i64: 1, 128>}, {pipeline_mode = #tpu.pipeline_mode<synchronous>, transform_indices = @transform_3, window_bounds = array<i64: 128, 128>}, {pipeline_mode = #tpu.pipeline_mode<synchronous>, transform_indices = @transform_4, window_bounds = array<i64: 1, 128>}, {transform_indices = @transform_5, window_bounds = array<i64: 16, 128>}, {transform_indices = @transform_6, window_bounds = array<i64: 16, 8>}]} {
    %c0 = arith.constant 0 : index
    %c0_0 = arith.constant 0 : index
    %0 = vector.load %arg1[%c0, %c0_0] : memref<16x32xf32, #tpu.memory_space<vmem>>, vector<16x32xf32>
    %1 = arith.truncf %0 : vector<16x32xf32> to vector<16x32xbf16>
    %c0_1 = arith.constant 0 : index
    %c0_2 = arith.constant 0 : index
    %2 = vector.load %arg2[%c0_1, %c0_2] : memref<32x128xbf16, #tpu.memory_space<vmem>>, vector<32x128xbf16>
    %cst = arith.constant dense<0.000000e+00> : vector<16x128xf32>
    %3 = tpu.matmul %1, %2, %cst {dimension_numbers = #tpu.dot_dimension_numbers<[1], [0], [0], [1], [0, 0, 1, 1], [], []>} : vector<16x32xbf16>, vector<32x128xbf16>, vector<16x128xf32> -> vector<16x128xf32>
    %c0_3 = arith.constant 0 : index
    %c0_4 = arith.constant 0 : index
    %4 = vector.load %arg3[%c0_3, %c0_4] : memref<1x128xf32, #tpu.memory_space<vmem>>, vector<1x128xf32>
    %5 = vector.broadcast %4 : vector<1x128xf32> to vector<16x128xf32>
    %6 = arith.addf %3, %5 : vector<16x128xf32>
    %cst_5 = arith.constant 0.000000e+00 : f32
    %7 = vector.broadcast %cst_5 : f32 to vector<16x128xf32>
    %8 = arith.maximumf %6, %7 : vector<16x128xf32>
    %9 = arith.truncf %8 : vector<16x128xf32> to vector<16x128xbf16>
    %c0_6 = arith.constant 0 : index
    %c0_7 = arith.constant 0 : index
    %10 = vector.load %arg4[%c0_6, %c0_7] : memref<128x128xbf16, #tpu.memory_space<vmem>>, vector<128x128xbf16>
    %cst_8 = arith.constant dense<0.000000e+00> : vector<16x128xf32>
    %11 = tpu.matmul %9, %10, %cst_8 {dimension_numbers = #tpu.dot_dimension_numbers<[1], [0], [0], [1], [0, 0, 1, 1], [], []>} : vector<16x128xbf16>, vector<128x128xbf16>, vector<16x128xf32> -> vector<16x128xf32>
    %c0_9 = arith.constant 0 : index
    %c0_10 = arith.constant 0 : index
    %12 = vector.load %arg5[%c0_9, %c0_10] : memref<1x128xf32, #tpu.memory_space<vmem>>, vector<1x128xf32>
    %13 = vector.broadcast %12 : vector<1x128xf32> to vector<16x128xf32>
    %14 = arith.addf %11, %13 : vector<16x128xf32>
    %15 = arith.truncf %14 : vector<16x128xf32> to vector<16x128xbf16>
    %c0_11 = arith.constant 0 : index
    %c0_12 = arith.constant 0 : index
    %16 = vector.load %arg6[%c0_11, %c0_12] : memref<16x128xbf16, #tpu.memory_space<vmem>>, vector<16x128xbf16>
    tpu.vector_store %arg6[%c0_11, %c0_12], %15 {strides = array<i32>} : memref<16x128xbf16, #tpu.memory_space<vmem>>, vector<16x128xbf16>,
    %17 = vector.extract_strided_slice %14 {offsets = [0, 0], sizes = [16, 8], strides = [1, 1]} : vector<16x128xf32> to vector<16x8xf32>
    %c0_13 = arith.constant 0 : index
    %c0_14 = arith.constant 0 : index
    %18 = vector.load %arg7[%c0_13, %c0_14] : memref<16x8xf32, #tpu.memory_space<vmem>>, vector<16x8xf32>
    tpu.vector_store %arg7[%c0_13, %c0_14], %17 {strides = array<i32>} : memref<16x8xf32, #tpu.memory_space<vmem>>, vector<16x8xf32>,
    return
  }
  func.func @transform_0(%arg0: i32) -> (i32, i32) {
    %c0_i32 = arith.constant 0 : i32
    %c0_i32_0 = arith.constant 0 : i32
    return %arg0, %c0_i32 : i32, i32
  }
  func.func @transform_1(%arg0: i32) -> (i32, i32) {
    %c0_i32 = arith.constant 0 : i32
    %c0_i32_0 = arith.constant 0 : i32
    %c0_i32_1 = arith.constant 0 : i32
    return %c0_i32, %c0_i32_0 : i32, i32
  }
  func.func @transform_2(%arg0: i32) -> (i32, i32) {
    %c0_i32 = arith.constant 0 : i32
    %c0_i32_0 = arith.constant 0 : i32
    %c0_i32_1 = arith.constant 0 : i32
    return %c0_i32, %c0_i32_0 : i32, i32
  }
  func.func @transform_3(%arg0: i32) -> (i32, i32) {
    %c0_i32 = arith.constant 0 : i32
    %c0_i32_0 = arith.constant 0 : i32
    %c0_i32_1 = arith.constant 0 : i32
    return %c0_i32, %c0_i32_0 : i32, i32
  }
  func.func @transform_4(%arg0: i32) -> (i32, i32) {
    %c0_i32 = arith.constant 0 : i32
    %c0_i32_0 = arith.constant 0 : i32
    %c0_i32_1 = arith.constant 0 : i32
    return %c0_i32, %c0_i32_0 : i32, i32
  }
  func.func @transform_5(%arg0: i32) -> (i32, i32) {
    %c0_i32 = arith.constant 0 : i32
    %c0_i32_0 = arith.constant 0 : i32
    return %arg0, %c0_i32 : i32, i32
  }
  func.func @transform_6(%arg0: i32) -> (i32, i32) {
    %c0_i32 = arith.constant 0 : i32
    %c0_i32_0 = arith.constant 0 : i32
    return %arg0, %c0_i32 : i32, i32
  }
}

</mosaic_0001>

<llo_original>
// kernel: tpu_custom_call.1
$region0: #{tpu_custom_call.1}
  #allocation0 [shape = 'u32[]', space=smem, size = 0x4, offset = 0x4, fixed_abs, tag = 'smem constant byte address 0x4 - core index']
  #allocation1 [shape = 'u32[144,128]{1,0:T(1,128)}', space=vmem, size = 0x12000, scoped, tag = 'internal scratch']
  %s0 = inlined_call_operand.hbm [shape: f32[8,32], index: 0, kind: input, shape index: {}]
  %s1 = inlined_call_operand.hbm [shape: bf16[32,128], index: 1, kind: input, shape index: {}]
  %s2 = inlined_call_operand.vmem [shape: f32[1,128], index: 2, kind: input, shape index: {}]
  %s3 = inlined_call_operand.hbm [shape: bf16[128,128], index: 3, kind: input, shape index: {}]
  %s4 = inlined_call_operand.vmem [shape: f32[1,128], index: 4, kind: input, shape index: {}]
  %s5 = inlined_call_operand.hbm [shape: bf16[8,128], index: 5, kind: output, shape index: {0}]
  %s6 = inlined_call_operand.hbm [shape: f32[8,8], index: 6, kind: output, shape index: {1}]
  %7 = xla_tuple %s5, %s6
  %s8 = sld [smem:[#allocation0]]
  $region50: #{tpu_custom_call.1} parent=0
    _
  %s10 = ssub.s32 1, %s8
  %s11 = scalar_select 0, %s10, %s8
  $region1: #{tpu_custom_call.1} parent=0
    #allocation2 [shape = 'u8[8192]{0}', space=vmem, size = 0x2000, scoped, tag = 'input window, operand 0, single buffered']
    #allocation3 [shape = 's32[1]{0}', space=sflag, size = 0x4, scoped, tag = 'scoped memory for tpu_custom_call.1']
    #allocation4 [shape = 's32[1]{0}', space=sflag, size = 0x4, scoped, tag = 'scoped memory for tpu_custom_call.1']
    #allocation5 [shape = 'u8[8192]{0}', space=vmem, size = 0x2000, scoped, tag = 'input window, operand 1, single buffered']
    #allocation6 [shape = 's32[1]{0}', space=sflag, size = 0x4, scoped, tag = 'scoped memory for tpu_custom_call.1']
    #allocation7 [shape = 'u8[32768]{0}', space=vmem, size = 0x8000, scoped, tag = 'input window, operand 3, single buffered']
    #allocation8 [shape = 'u8[4096]{0}', space=vmem, size = 0x1000, scoped, tag = 'output window, operand 0, single buffered']
    #allocation9 [shape = 'u8[8192]{0}', space=vmem, size = 0x2000, scoped, tag = 'output window, operand 1, single buffered']
    #allocation10 [shape = 's32[1]{0}', space=sflag, size = 0x4, scoped, tag = 'scoped memory for tpu_custom_call.1']
    %12 = vsyncpa [#allocation3], 0
    %13 = vsyncpa [#allocation6], 0
    %14 = vsyncpa [#allocation4], 0
    %15 = vsyncpa [#allocation10], 0
    // Predicated region
    $region2: #{tpu_custom_call.1} parent=1 // pred_check
      _
    $region3: #{tpu_custom_call.1} parent=1 // pred_check_branch
      %17 = sbr.rel (0) target = $region5
    $region4: #{tpu_custom_call.1} parent=1 // pred_region
      %s19 = ssub.s32 256, 128
      %20 = vsyncadd [#allocation3], %s19
      %s21 = sshll.u32 [#allocation2], 4
      %s22 = int_to_ptr.vmem [resolvable:$true] %s21
      %27 = dma.hbm_to_vmem [thread:$0]  %s0, 128, %s22, [#allocation3], 128, 128, 8
    $region5: #{tpu_custom_call.1} parent=1 // pred_fallthru
      _
    // Predicated region
    $region6: #{tpu_custom_call.1} parent=1 // pred_check
      _
    $region7: #{tpu_custom_call.1} parent=1 // pred_check_branch
      %29 = sbr.rel (0) target = $region9
    $region8: #{tpu_custom_call.1} parent=1 // pred_region
      %s31 = ssub.s32 256, 256
      %32 = vsyncadd [#allocation6], %s31
      %s33 = sshll.u32 [#allocation5], 4
      %s34 = int_to_ptr.vmem [resolvable:$true] %s33
      %39 = dma.hbm_to_vmem [thread:$0]  %s1, 256, %s34, [#allocation6], 64, 64, 4
    $region9: #{tpu_custom_call.1} parent=1 // pred_fallthru
      _
    // Predicated region
    $region10: #{tpu_custom_call.1} parent=1 // pred_check
      _
    $region11: #{tpu_custom_call.1} parent=1 // pred_check_branch
      %41 = sbr.rel (0) target = $region13
    $region12: #{tpu_custom_call.1} parent=1 // pred_region
      _
    $region13: #{tpu_custom_call.1} parent=1 // pred_fallthru
      _
    // Predicated region
    $region14: #{tpu_custom_call.1} parent=1 // pred_check
      _
    $region15: #{tpu_custom_call.1} parent=1 // pred_check_branch
      %43 = sbr.rel (0) target = $region17
    $region16: #{tpu_custom_call.1} parent=1 // pred_region
      %s45 = ssub.s32 1024, 1024
      %46 = vsyncadd [#allocation6], %s45
      %s47 = sshll.u32 [#allocation7], 4
      %s48 = int_to_ptr.vmem [resolvable:$true] %s47
      %53 = dma.hbm_to_vmem [thread:$0]  %s3, 1024, %s48, [#allocation6], 64, 64, 4
    $region17: #{tpu_custom_call.1} parent=1 // pred_fallthru
      _
    // Predicated region
    $region18: #{tpu_custom_call.1} parent=1 // pred_check
      _
    $region19: #{tpu_custom_call.1} parent=1 // pred_check_branch
      %55 = sbr.rel (0) target = $region21
    $region20: #{tpu_custom_call.1} parent=1 // pred_region
      _
    $region21: #{tpu_custom_call.1} parent=1 // pred_fallthru
      _
    // Predicated region
    $region22: #{tpu_custom_call.1} parent=1 // pred_check
      _
    $region23: #{tpu_custom_call.1} parent=1 // pred_check_branch
      %57 = sbr.rel (0) target = $region25
    $region24: #{tpu_custom_call.1} parent=1 // pred_region
      %58 = dma.done [#allocation3], 256
    $region25: #{tpu_custom_call.1} parent=1 // pred_fallthru
      _
    // Predicated region
    $region26: #{tpu_custom_call.1} parent=1 // pred_check
      _
    $region27: #{tpu_custom_call.1} parent=1 // pred_check_branch
      %60 = sbr.rel (0) target = $region29
    $region28: #{tpu_custom_call.1} parent=1 // pred_region
      %61 = dma.done [#allocation6], 256
    $region29: #{tpu_custom_call.1} parent=1 // pred_fallthru
      _
    // Predicated region
    $region30: #{tpu_custom_call.1} parent=1 // pred_check
      _
    $region31: #{tpu_custom_call.1} parent=1 // pred_check_branch
      %63 = sbr.rel (0) target = $region33
    $region32: #{tpu_custom_call.1} parent=1 // pred_region
      %64 = dma.done [#allocation6], 1024
    $region33: #{tpu_custom_call.1} parent=1 // pred_fallthru
      _
    %v66 = vld [vmem:[#allocation2] sm:$0xff]
    %v67 = vld [vmem:[#allocation2 + $0x8] sm:$0xff]
    %v68 = vpack.c.bf16 %v67, %v66
    %v69 = vld [vmem:[#allocation5] sm:$0xf]
    %v70 = vld [vmem:[#allocation5 + $0x4] sm:$0xf]
    %v71 = vld [vmem:[#allocation5 + $0x8] sm:$0xf]
    %v72 = vld [vmem:[#allocation5 + $0xc] sm:$0xf]
    %v73 = vld [vmem:[%s2] sm:$0x1]
    %v75 = vlaneseq
    %v76 = vshrl.u32 %v75, 7
    %v77 = vsub.s32 0, %v76
    %v78 = vrot.slane %v73, %v77
    %v84 = vunpack.c.l.b16 %v69
    %v85 = vunpack.c.l.b16 %v70
    %v86 = vunpack.c.l.b16 %v71
    %v87 = vunpack.c.l.b16 %v72
    %v88 = vpack.c.b16 %v85, %v84
    %v89 = vpack.c.b16 %v87, %v86
    %vm92 = vcmask 261120
    %v94 = vsel %vm92, %v68, 0
    %96 = vmatprep.subr.bf16.mxu0 0
    %97 = vmatpush1.bf16.msra.mxu0 0
    %98 = vmatprep.subr.bf16.mxu0 0
    %99 = vmatpush1.bf16.msra.mxu0 0
    %100 = vmatprep.subr.bf16.mxu0 0
    %101 = vmatpush1.bf16.msra.mxu0 0
    %102 = vmatprep.subr.bf16.mxu0 0
    %103 = vmatpush1.bf16.msra.mxu0 0
    %104 = vmatprep.subr.bf16.mxu0 0
    %105 = vmatpush1.bf16.msra.mxu0 0
    %106 = vmatprep.subr.bf16.mxu0 0
    %107 = vmatpush1.bf16.msra.mxu0 0
    %108 = vmatprep.subr.bf16.mxu0 0
    %109 = vmatpush1.bf16.msra.mxu0 %v89
    %110 = vmatprep.subr.bf16.mxu0 0
    %111 = vmatpush1.bf16.msra.mxu0 %v88
    %112 = vmatprep.subr.bf16.mxu0 0
    %113 = vmatpush2.bf16.msra.mxu0 0
    %114 = vmatprep.subr.bf16.mxu0 0
    %115 = vmatpush2.bf16.msra.mxu0 0
    %116 = vmatprep.subr.bf16.mxu0 0
    %117 = vmatpush2.bf16.msra.mxu0 0
    %118 = vmatprep.subr.bf16.mxu0 0
    %119 = vmatpush2.bf16.msra.mxu0 0
    %120 = vmatprep.subr.bf16.mxu0 0
    %121 = vmatpush2.bf16.msra.mxu0 0
    %122 = vmatprep.subr.bf16.mxu0 0
    %123 = vmatpush2.bf16.msra.mxu0 0
    %124 = vmatprep.subr.bf16.mxu0 0
    %125 = vmatpush2.bf16.msra.mxu0 0
    %126 = vmatprep.subr.bf16.mxu0 0
    %127 = vmatpush2.bf16.msra.mxu0 0
    %128 = vmatprep.mubr.bf16.mxu0 0
    %129 = vmatmul.mubr.bf16.gmra.mxu0 %v94
    %v130 = vpop.f32.mrf.mxu0
    %v131 = vadd.f32 %v78, %v130
    %v132 = vpop.f32.mrf.mxu0
    %v133 = vpop.f32.mrf.mxu0
    %v134 = vadd.f32 %v78, %v133
    %v135 = vpop.f32.mrf.mxu0
    %136 = vdwg.mxu0
    %v137 = vmax.f32 %v131, 0.0
    %v138 = vmax.f32 %v134, 0.0
    %v139 = vpack.c.bf16 %v138, %v137
    %v140 = vld [vmem:[#allocation7] sm:$0xf]
    %v141 = vld [vmem:[#allocation7 + $0x4] sm:$0xf]
    %v142 = vld [vmem:[#allocation7 + $0x8] sm:$0xf]
    %v143 = vld [vmem:[#allocation7 + $0xc] sm:$0xf]
    %v144 = vld [vmem:[#allocation7 + $0x10] sm:$0xf]
    %v145 = vld [vmem:[#allocation7 + $0x14] sm:$0xf]
    %v146 = vld [vmem:[#allocation7 + $0x18] sm:$0xf]
    %v147 = vld [vmem:[#allocation7 + $0x1c] sm:$0xf]
    %v148 = vld [vmem:[#allocation7 + $0x20] sm:$0xf]
    %v149 = vld [vmem:[#allocation7 + $0x24] sm:$0xf]
    %v150 = vld [vmem:[#allocation7 + $0x28] sm:$0xf]
    %v151 = vld [vmem:[#allocation7 + $0x2c] sm:$0xf]
    %v152 = vld [vmem:[#allocation7 + $0x30] sm:$0xf]
    %v153 = vld [vmem:[#allocation7 + $0x34] sm:$0xf]
    %v154 = vld [vmem:[#allocation7 + $0x38] sm:$0xf]
    %v155 = vld [vmem:[#allocation7 + $0x3c] sm:$0xf]
    %v156 = vld [vmem:[%s4] sm:$0x1]
    %v158 = vlaneseq
    %v159 = vshrl.u32 %v158, 7
    %v160 = vsub.s32 0, %v159
    %v161 = vrot.slane %v156, %v160
    %v179 = vunpack.c.l.b16 %v140
    %v180 = vunpack.c.l.b16 %v141
    %v181 = vunpack.c.l.b16 %v142
    %v182 = vunpack.c.l.b16 %v143
    %v183 = vunpack.c.l.b16 %v144
    %v184 = vunpack.c.l.b16 %v145
    %v185 = vunpack.c.l.b16 %v146
    %v186 = vunpack.c.l.b16 %v147
    %v187 = vunpack.c.l.b16 %v148
    %v188 = vunpack.c.l.b16 %v149
    %v189 = vunpack.c.l.b16 %v150
    %v190 = vunpack.c.l.b16 %v151
    %v191 = vunpack.c.l.b16 %v152
    %v192 = vunpack.c.l.b16 %v153
    %v193 = vunpack.c.l.b16 %v154
    %v194 = vunpack.c.l.b16 %v155
    %v195 = vpack.c.b16 %v180, %v179
    %v196 = vpack.c.b16 %v182, %v181
    %v197 = vpack.c.b16 %v184, %v183
    %v198 = vpack.c.b16 %v186, %v185
    %v199 = vpack.c.b16 %v188, %v187
    %v200 = vpack.c.b16 %v190, %v189
    %v201 = vpack.c.b16 %v192, %v191
    %v202 = vpack.c.b16 %v194, %v193
    %211 = vmatprep.subr.bf16.mxu0 0
    %212 = vmatpush1.bf16.msra.mxu0 %v202
    %213 = vmatprep.subr.bf16.mxu0 0
    %214 = vmatpush1.bf16.msra.mxu0 %v201
    %215 = vmatprep.subr.bf16.mxu0 0
    %216 = vmatpush1.bf16.msra.mxu0 %v200
    %217 = vmatprep.subr.bf16.mxu0 0
    %218 = vmatpush1.bf16.msra.mxu0 %v199
    %219 = vmatprep.subr.bf16.mxu0 0
    %220 = vmatpush1.bf16.msra.mxu0 %v198
    %221 = vmatprep.subr.bf16.mxu0 0
    %222 = vmatpush1.bf16.msra.mxu0 %v197
    %223 = vmatprep.subr.bf16.mxu0 0
    %224 = vmatpush1.bf16.msra.mxu0 %v196
    %225 = vmatprep.subr.bf16.mxu0 0
    %226 = vmatpush1.bf16.msra.mxu0 %v195
    %227 = vmatprep.subr.bf16.mxu0 0
    %228 = vmatpush2.bf16.msra.mxu0 0
    %229 = vmatprep.subr.bf16.mxu0 0
    %230 = vmatpush2.bf16.msra.mxu0 0
    %231 = vmatprep.subr.bf16.mxu0 0
    %232 = vmatpush2.bf16.msra.mxu0 0
    %233 = vmatprep.subr.bf16.mxu0 0
    %234 = vmatpush2.bf16.msra.mxu0 0
    %235 = vmatprep.subr.bf16.mxu0 0
    %236 = vmatpush2.bf16.msra.mxu0 0
    %237 = vmatprep.subr.bf16.mxu0 0
    %238 = vmatpush2.bf16.msra.mxu0 0
    %239 = vmatprep.subr.bf16.mxu0 0
    %240 = vmatpush2.bf16.msra.mxu0 0
    %241 = vmatprep.subr.bf16.mxu0 0
    %242 = vmatpush2.bf16.msra.mxu0 0
    %243 = vmatprep.mubr.bf16.mxu0 0
    %244 = vmatmul.mubr.bf16.gmra.mxu0 %v139
    %v245 = vpop.f32.mrf.mxu0
    %v246 = vadd.f32 %v161, %v245
    %v247 = vpop.f32.mrf.mxu0
    %v248 = vpop.f32.mrf.mxu0
    %v249 = vadd.f32 %v161, %v248
    %v250 = vpop.f32.mrf.mxu0
    %251 = vdwg.mxu0
    %v252 = vpack.c.bf16 %v249, %v246
    %v254 = vunpack.c.l.b16 %v252
    %v255 = vunpack.c.h.b16 %v252
    %v256 = vpack.c.b16 %v254, %v254
    %v257 = vpack.c.b16 %v255, %v255
    %260 = vst [vmem:[#allocation8] sm:$0xf] %v256
    %261 = vst [vmem:[#allocation8 + $0x4] sm:$0xf] %v257
    %vm262 = vcmask 64512
    %263 = vst.msk [vmem:[#allocation9] sm:$0xff] %vm262, %v246
    %264 = vst.msk [vmem:[#allocation9 + $0x8] sm:$0xff] %vm262, %v249
    // Predicated region
    $region34: #{tpu_custom_call.1} parent=1 // pred_check
      _
    $region35: #{tpu_custom_call.1} parent=1 // pred_check_branch
      %266 = sbr.rel (0) target = $region37
    $region36: #{tpu_custom_call.1} parent=1 // pred_region
      %s268 = ssub.s32 128, 64
      %269 = vsyncadd [#allocation4], %s268
      %s270 = sshll.u32 [#allocation8], 4
      %s271 = int_to_ptr.vmem [resolvable:$true] %s270
      %276 = dma.vmem_to_hbm [thread:$0]  %s271, 64, %s5, [#allocation4], 64, 64, 4
    $region37: #{tpu_custom_call.1} parent=1 // pred_fallthru
      _
    // Predicated region
    $region38: #{tpu_custom_call.1} parent=1 // pred_check
      _
    $region39: #{tpu_custom_call.1} parent=1 // pred_check_branch
      %278 = sbr.rel (0) target = $region41
    $region40: #{tpu_custom_call.1} parent=1 // pred_region
      %s280 = ssub.s32 256, 128
      %281 = vsyncadd [#allocation10], %s280
      %s282 = sshll.u32 [#allocation9], 4
      %s283 = int_to_ptr.vmem [resolvable:$true] %s282
      %288 = dma.vmem_to_hbm [thread:$0]  %s283, 128, %s6, [#allocation10], 128, 128, 8
    $region41: #{tpu_custom_call.1} parent=1 // pred_fallthru
      _
    // Predicated region
    $region42: #{tpu_custom_call.1} parent=1 // pred_check
      _
    $region43: #{tpu_custom_call.1} parent=1 // pred_check_branch
      %290 = sbr.rel (0) target = $region45
    $region44: #{tpu_custom_call.1} parent=1 // pred_region
      %291 = dma.done [#allocation4], 128
    $region45: #{tpu_custom_call.1} parent=1 // pred_fallthru
      _
    // Predicated region
    $region46: #{tpu_custom_call.1} parent=1 // pred_check
      _
    $region47: #{tpu_custom_call.1} parent=1 // pred_check_branch
      %293 = sbr.rel (0) target = $region49
    $region48: #{tpu_custom_call.1} parent=1 // pred_region
      %294 = dma.done [#allocation10], 256
    $region49: #{tpu_custom_call.1} parent=1 // pred_fallthru
      _
    %295 = vsyncpa [#allocation3], 1
    %296 = vsyncpa [#allocation6], 1
    %297 = vsyncpa [#allocation4], 1
    %298 = vsyncpa [#allocation10], 1

</llo_original>
